<compile_context>
chip_gen: v5e
topology: v5e:2x2
jax: 0.10.0
libtpu: 0.0.40
codegen_flags: <defaults>
</compile_context>

<pallas_src>
import functools

import jax
import jax.numpy as jnp
from jax import lax
from jax.experimental import pallas as pl
from jax.experimental.pallas import tpu as pltpu


def _round_up(x, m):
    return ((x + m - 1) // m) * m


def _linear_logsoftmax_kernel(x_ref, w_ref, b_ref, o_ref, *, nclass, matmul_dtype):
    # x_ref: (TB, D), w_ref: (Cp, D) [native PyTorch layout], b_ref: (1, Cp),
    # o_ref: (TB, Cp)
    x = x_ref[...]
    w = w_ref[...]
    if matmul_dtype is not None:
        x = x.astype(matmul_dtype)
        w = w.astype(matmul_dtype)

    # Contract x dim 1 with w dim 1 (i.e. x @ w.T) on the MXU, f32 accumulator.
    logits = lax.dot_general(
        x, w,
        dimension_numbers=(((1,), (1,)), ((), ())),
        preferred_element_type=jnp.float32,
    ) + b_ref[...].astype(jnp.float32)

    # Mask padded class columns so they contribute nothing to the softmax sum.
    cp = logits.shape[-1]
    if cp != nclass:
        col = lax.broadcasted_iota(jnp.int32, logits.shape, 1)
        logits = jnp.where(col < nclass, logits, jnp.float32(-1e30))

    # Numerically stable log-softmax over the class (last) axis, all in f32.
    m = jnp.max(logits, axis=-1, keepdims=True)
    shifted = logits - m
    lse = jnp.log(jnp.sum(jnp.exp(shifted), axis=-1, keepdims=True))
    o_ref[...] = (shifted - lse).astype(o_ref.dtype)


def linear_logsoftmax(x, weight, bias, *, tile_b=256, matmul_dtype=None):
    """x: (B, D) f32; weight: (C, D) f32 (PyTorch nn.Linear layout); bias: (C,) f32.

    Returns log_softmax(x @ weight.T + bias, axis=1) with shape (B, C), f32.
    """
    B, D = x.shape
    C, D_w = weight.shape
    assert D == D_w, "weight must be (nclass, input_dim)"

    # Lane-dense class axis; sublane-aligned batch tile.
    Cp = _round_up(C, 128)
    TB = min(tile_b, _round_up(B, 8))
    Bp = _round_up(B, TB)

    xp = x if Bp == B else jnp.pad(x, ((0, Bp - B), (0, 0)))
    wp = weight if Cp == C else jnp.pad(weight, ((0, Cp - C), (0, 0)))
    bp = bias if Cp == C else jnp.pad(bias, (0, Cp - C))
    b2d = bp.reshape(1, Cp)

    grid = (Bp // TB,)

    # VMEM budget: double-buffered x/out tiles + resident weight/bias + slack.
    itemsize = 4
    vmem_bytes = (
        2 * (TB * D + TB * Cp) * itemsize
        + (Cp * D + Cp) * itemsize
        + (2 << 20)
    )
    vmem_bytes = int(min(max(vmem_bytes, 16 << 20), 64 << 20))  # v7x-safe cap

    kernel = functools.partial(
        _linear_logsoftmax_kernel, nclass=C, matmul_dtype=matmul_dtype)

    out = pl.pallas_call(
        kernel,
        out_shape=jax.ShapeDtypeStruct((Bp, Cp), jnp.float32),
        grid_spec=pltpu.PrefetchScalarGridSpec(
            num_scalar_prefetch=0,
            grid=grid,
            in_specs=[
                pl.BlockSpec((TB, D), lambda i: (i, 0)),   # x: streamed per batch tile
                pl.BlockSpec((Cp, D), lambda i: (0, 0)),   # weight: VMEM-resident
                pl.BlockSpec((1, Cp), lambda i: (0, 0)),   # bias:   VMEM-resident
            ],
            out_specs=pl.BlockSpec((TB, Cp), lambda i: (i, 0)),
        ),
        compiler_params=pltpu.CompilerParams(
            dimension_semantics=("parallel",),
            vmem_limit_bytes=vmem_bytes,
        ),
    )(xp, wp, b2d)

    return out[:B, :C]


def _reference(x, weight, bias):
    logits = x @ weight.T + bias
    return jax.nn.log_softmax(logits, axis=1)


if __name__ == "__main__":
    key = jax.random.PRNGKey(0)

    # Case 1: small shapes consistent with the module (input_dim=32, nclass=16, batch=8).
    B, D, C = 8, 32, 16
    kx, kw, kb, k2 = jax.random.split(key, 4)
    bound = 1.0 / jnp.sqrt(jnp.float32(D))
    x = jax.random.normal(kx, (B, D), dtype=jnp.float32)
    weight = jax.random.uniform(kw, (C, D), minval=-bound, maxval=bound,
                                dtype=jnp.float32)
    bias = jax.random.uniform(kb, (C,), minval=-bound, maxval=bound,
                              dtype=jnp.float32)

    out = jax.block_until_ready(linear_logsoftmax(x, weight, bias))
    ref = _reference(x, weight, bias)
    assert out.shape == (B, C)
    assert jnp.allclose(out, ref, atol=1e-5, rtol=1e-5), "mismatch vs reference (case 1)"

    # Case 2: exercise the batch-tiling + row/column padding path (B not a tile multiple).
    B2 = 136
    x2 = jax.random.normal(k2, (B2, D), dtype=jnp.float32)
    out2 = jax.block_until_ready(linear_logsoftmax(x2, weight, bias, tile_b=64))
    ref2 = _reference(x2, weight, bias)
    assert out2.shape == (B2, C)
    assert jnp.allclose(out2, ref2, atol=1e-5, rtol=1e-5), "mismatch vs reference (case 2)"

    print("KERNEL_OK")
</pallas_src>

<mosaic_0001>
module attributes {stable_mosaic.version = 11 : i64} {
  func.func @_linear_logsoftmax_kernel(%arg0: i32, %arg1: memref<8x32xf32, #tpu.memory_space<vmem>>, %arg2: memref<128x32xf32, #tpu.memory_space<vmem>>, %arg3: memref<1x128xf32, #tpu.memory_space<vmem>>, %arg4: memref<8x128xf32, #tpu.memory_space<vmem>>) attributes {dimension_semantics = [#tpu.dimension_semantics<parallel>], iteration_bounds = array<i64: 1>, scalar_prefetch = 0 : i64, scratch_operands = 0 : i64, tpu.core_type = #tpu.core_type<tc>, window_params = [{transform_indices = @transform_0, window_bounds = array<i64: 8, 32>}, {pipeline_mode = #tpu.pipeline_mode<synchronous>, transform_indices = @transform_1, window_bounds = array<i64: 128, 32>}, {pipeline_mode = #tpu.pipeline_mode<synchronous>, transform_indices = @transform_2, window_bounds = array<i64: 1, 128>}, {transform_indices = @transform_3, window_bounds = array<i64: 8, 128>}]} {
    %c0 = arith.constant 0 : index
    %c0_0 = arith.constant 0 : index
    %0 = vector.load %arg1[%c0, %c0_0] : memref<8x32xf32, #tpu.memory_space<vmem>>, vector<8x32xf32>
    %c0_1 = arith.constant 0 : index
    %c0_2 = arith.constant 0 : index
    %1 = vector.load %arg2[%c0_1, %c0_2] : memref<128x32xf32, #tpu.memory_space<vmem>>, vector<128x32xf32>
    %cst = arith.constant dense<0.000000e+00> : vector<8x128xf32>
    %2 = tpu.matmul %0, %1, %cst {dimension_numbers = #tpu.dot_dimension_numbers<[1], [1], [0], [0], [0, 0, 1, 0], [], []>} : vector<8x32xf32>, vector<128x32xf32>, vector<8x128xf32> -> vector<8x128xf32>
    %c0_3 = arith.constant 0 : index
    %c0_4 = arith.constant 0 : index
    %3 = vector.load %arg3[%c0_3, %c0_4] : memref<1x128xf32, #tpu.memory_space<vmem>>, vector<1x128xf32>
    %4 = vector.broadcast %3 : vector<1x128xf32> to vector<8x128xf32>
    %5 = arith.addf %2, %4 : vector<8x128xf32>
    %6 = tpu.iota {dimensions = array<i32: 1>} : vector<8x128xi32>
    %c16_i32 = arith.constant 16 : i32
    %7 = vector.broadcast %c16_i32 : i32 to vector<8x128xi32>
    %8 = arith.cmpi slt, %6, %7 : vector<8x128xi32>
    %cst_5 = arith.constant -1.000000e+30 : f32
    %9 = vector.broadcast %cst_5 : f32 to vector<8x128xf32>
    %10 = arith.select %8, %5, %9 : vector<8x128xi1>, vector<8x128xf32>
    %cst_6 = arith.constant dense<0xFF800000> : vector<8xf32>
    %11 = vector.multi_reduction <maximumf>, %10, %cst_6 [1] : vector<8x128xf32> to vector<8xf32>
    %12 = vector.shape_cast %11 : vector<8xf32> to vector<8x1xf32>
    %13 = vector.broadcast %12 : vector<8x1xf32> to vector<8x128xf32>
    %14 = arith.subf %10, %13 : vector<8x128xf32>
    %15 = math.exp %14 : vector<8x128xf32>
    %cst_7 = arith.constant dense<0.000000e+00> : vector<8xf32>
    %16 = vector.multi_reduction <add>, %15, %cst_7 [1] : vector<8x128xf32> to vector<8xf32>
    %17 = vector.shape_cast %16 : vector<8xf32> to vector<8x1xf32>
    %18 = math.log %17 : vector<8x1xf32>
    %19 = vector.broadcast %18 : vector<8x1xf32> to vector<8x128xf32>
    %20 = arith.subf %14, %19 : vector<8x128xf32>
    %c0_8 = arith.constant 0 : index
    %c0_9 = arith.constant 0 : index
    %21 = vector.load %arg4[%c0_8, %c0_9] : memref<8x128xf32, #tpu.memory_space<vmem>>, vector<8x128xf32>
    tpu.vector_store %arg4[%c0_8, %c0_9], %20 {strides = array<i32>} : memref<8x128xf32, #tpu.memory_space<vmem>>, vector<8x128xf32>,
    return
  }
  func.func @transform_0(%arg0: i32) -> (i32, i32) {
    %c0_i32 = arith.constant 0 : i32
    %c0_i32_0 = arith.constant 0 : i32
    return %arg0, %c0_i32 : i32, i32
  }
  func.func @transform_1(%arg0: i32) -> (i32, i32) {
    %c0_i32 = arith.constant 0 : i32
    %c0_i32_0 = arith.constant 0 : i32
    %c0_i32_1 = arith.constant 0 : i32
    return %c0_i32, %c0_i32_0 : i32, i32
  }
  func.func @transform_2(%arg0: i32) -> (i32, i32) {
    %c0_i32 = arith.constant 0 : i32
    %c0_i32_0 = arith.constant 0 : i32
    %c0_i32_1 = arith.constant 0 : i32
    return %c0_i32, %c0_i32_0 : i32, i32
  }
  func.func @transform_3(%arg0: i32) -> (i32, i32) {
    %c0_i32 = arith.constant 0 : i32
    %c0_i32_0 = arith.constant 0 : i32
    return %arg0, %c0_i32 : i32, i32
  }
}

</mosaic_0001>

<llo_original>
// kernel: tpu_custom_call.1
$region0: #{tpu_custom_call.1}
  #allocation0 [shape = 'u32[]', space=smem, size = 0x4, offset = 0x4, fixed_abs, tag = 'smem constant byte address 0x4 - core index']
  #allocation1 [shape = 'u32[72,128]{1,0:T(1,128)}', space=vmem, size = 0x9000, scoped, tag = 'internal scratch']
  %s0 = inlined_call_operand.vmem [shape: f32[8,32], index: 0, kind: input, shape index: {}]
  %s1 = inlined_call_operand.vmem [shape: f32[128,32], index: 1, kind: input, shape index: {}]
  %s2 = inlined_call_operand.vmem [shape: f32[1,128], index: 2, kind: input, shape index: {}]
  %s3 = inlined_call_operand.hbm [shape: f32[8,128], index: 3, kind: output, shape index: {}]
  %s4 = sld [smem:[#allocation0]]
  $region22: #{tpu_custom_call.1} parent=0
    _
  %s6 = ssub.s32 1, %s4
  %s7 = scalar_select 0, %s6, %s4
  $region1: #{tpu_custom_call.1} parent=0
    #allocation2 [shape = 'u8[4096]{0}', space=vmem, size = 0x1000, scoped, tag = 'output window, operand 0, single buffered']
    #allocation3 [shape = 's32[1]{0}', space=sflag, size = 0x4, scoped, tag = 'scoped memory for tpu_custom_call.1']
    %8 = vsyncpa [#allocation3], 0
    // Predicated region
    $region2: #{tpu_custom_call.1} parent=1 // pred_check
      _
    $region3: #{tpu_custom_call.1} parent=1 // pred_check_branch
      %10 = sbr.rel (0) target = $region5
    $region4: #{tpu_custom_call.1} parent=1 // pred_region
      _
    $region5: #{tpu_custom_call.1} parent=1 // pred_fallthru
      _
    // Predicated region
    $region6: #{tpu_custom_call.1} parent=1 // pred_check
      _
    $region7: #{tpu_custom_call.1} parent=1 // pred_check_branch
      %12 = sbr.rel (0) target = $region9
    $region8: #{tpu_custom_call.1} parent=1 // pred_region
      _
    $region9: #{tpu_custom_call.1} parent=1 // pred_fallthru
      _
    // Predicated region
    $region10: #{tpu_custom_call.1} parent=1 // pred_check
      _
    $region11: #{tpu_custom_call.1} parent=1 // pred_check_branch
      %14 = sbr.rel (0) target = $region13
    $region12: #{tpu_custom_call.1} parent=1 // pred_region
      _
    $region13: #{tpu_custom_call.1} parent=1 // pred_fallthru
      _
    %v15 = vld [vmem:[%s0] sm:$0xff]
    %v16 = vld [vmem:[%s1] sm:$0xff]
    %v17 = vld [vmem:[%s1 + $0x8] sm:$0xff]
    %v18 = vld [vmem:[%s1 + $0x10] sm:$0xff]
    %v19 = vld [vmem:[%s1 + $0x18] sm:$0xff]
    %v20 = vld [vmem:[%s1 + $0x20] sm:$0xff]
    %v21 = vld [vmem:[%s1 + $0x28] sm:$0xff]
    %v22 = vld [vmem:[%s1 + $0x30] sm:$0xff]
    %v23 = vld [vmem:[%s1 + $0x38] sm:$0xff]
    %v24 = vld [vmem:[%s1 + $0x40] sm:$0xff]
    %v25 = vld [vmem:[%s1 + $0x48] sm:$0xff]
    %v26 = vld [vmem:[%s1 + $0x50] sm:$0xff]
    %v27 = vld [vmem:[%s1 + $0x58] sm:$0xff]
    %v28 = vld [vmem:[%s1 + $0x60] sm:$0xff]
    %v29 = vld [vmem:[%s1 + $0x68] sm:$0xff]
    %v30 = vld [vmem:[%s1 + $0x70] sm:$0xff]
    %v31 = vld [vmem:[%s1 + $0x78] sm:$0xff]
    %v32 = vld [vmem:[%s2] sm:$0x1]
    %v34 = vperm.slane %v32, 0
    %vm36 = vcmask 261120
    %v38 = vsel %vm36, %v15, 0
    %v41 = vsel %vm36, %v16, 0
    %v44 = vsel %vm36, %v17, 0
    %v47 = vsel %vm36, %v18, 0
    %v50 = vsel %vm36, %v19, 0
    %v53 = vsel %vm36, %v20, 0
    %v56 = vsel %vm36, %v21, 0
    %v59 = vsel %vm36, %v22, 0
    %v62 = vsel %vm36, %v23, 0
    %v65 = vsel %vm36, %v24, 0
    %v68 = vsel %vm36, %v25, 0
    %v71 = vsel %vm36, %v26, 0
    %v74 = vsel %vm36, %v27, 0
    %v77 = vsel %vm36, %v28, 0
    %v80 = vsel %vm36, %v29, 0
    %v83 = vsel %vm36, %v30, 0
    %v86 = vsel %vm36, %v31, 0
    %88 = vmatpush.xpose.msra.mxu0 %v86
    %89 = vmatpush.xpose.msra.mxu0 %v83
    %90 = vmatpush.xpose.msra.mxu0 %v80
    %91 = vmatpush.xpose.msra.mxu0 %v77
    %92 = vmatpush.xpose.msra.mxu0 %v74
    %93 = vmatpush.xpose.msra.mxu0 %v71
    %94 = vmatpush.xpose.msra.mxu0 %v68
    %95 = vmatpush.xpose.msra.mxu0 %v65
    %96 = vmatpush.xpose.msra.mxu0 %v62
    %97 = vmatpush.xpose.msra.mxu0 %v59
    %98 = vmatpush.xpose.msra.mxu0 %v56
    %99 = vmatpush.xpose.msra.mxu0 %v53
    %100 = vmatpush.xpose.msra.mxu0 %v50
    %101 = vmatpush.xpose.msra.mxu0 %v47
    %102 = vmatpush.xpose.msra.mxu0 %v44
    %103 = vmatpush.xpose.msra.mxu0 %v41
    %104 = vmatmul.f32.gmra.mxu0 %v38
    %v105 = vpop.f32.mrf.mxu0
    %v106 = vadd.f32 %v34, %v105
    %107 = vdwg.mxu0
    %v108 = vlaneseq
    %v109 = vand.u32 %v108, 127
    %vm110 = vcmp.lt.s32.totalorder %v109, 16
    %v111 = vsel %vm110, %v106, -1e+30
    %112 = vmax.xlane.f32.xlu0 %v111
    %v113 = vpop.xlane.xlu0 %112
    %v114 = vsub.f32 %v111, %v113
    %v115 = vmul.f32 %v114, 1.442695
    %v116 = vpow.pop %v115
    %117 = vadd.xlane.f32.xlu0 %v116
    %v118 = vpop.xlane.xlu0 %117
    %v119 = vlog2.pop %v118
    %v120 = vmul.f32 %v119, 0.6931472
    %v121 = vsub.f32 %v114, %v120
    %122 = vst [vmem:[#allocation2] sm:$0xff] %v121
    // Predicated region
    $region14: #{tpu_custom_call.1} parent=1 // pred_check
      _
    $region15: #{tpu_custom_call.1} parent=1 // pred_check_branch
      %124 = sbr.rel (0) target = $region17
    $region16: #{tpu_custom_call.1} parent=1 // pred_region
      %126 = vsyncadd [#allocation3], 0
      %s128 = sshll.u32 [#allocation2], 4
      %s129 = int_to_ptr.vmem [resolvable:$true] %s128
      %s130 = sshll.u32 %s3, 4
      %s131 = int_to_ptr.hbm [resolvable:$true] %s130
      %133 = dma.vmem_to_hbm [thread:$0]  %s129, 128, %s131, [#allocation3]
    $region17: #{tpu_custom_call.1} parent=1 // pred_fallthru
      _
    // Predicated region
    $region18: #{tpu_custom_call.1} parent=1 // pred_check
      _
    $region19: #{tpu_custom_call.1} parent=1 // pred_check_branch
      %135 = sbr.rel (0) target = $region21
    $region20: #{tpu_custom_call.1} parent=1 // pred_region
      %137 = dma.done [#allocation3], 128
    $region21: #{tpu_custom_call.1} parent=1 // pred_fallthru
      _
    %138 = vsyncpa [#allocation3], 1

</llo_original>
